<compile_context>
chip_gen: v7x
topology: tpu7x:2x2x1
jax: 0.10.0
libtpu: 0.0.40
codegen_flags: <defaults>
</compile_context>

<pallas_src>
import functools

import jax
import jax.numpy as jnp
from jax.experimental import pallas as pl
from jax.experimental.pallas import tpu as pltpu


# ---------------------------------------------------------------------------
# GradReverse: identity forward, (-constant * grad) backward.
# ---------------------------------------------------------------------------
@functools.partial(jax.custom_vjp, nondiff_argnums=(1,))
def grad_reverse(x, constant=1.0):
    return x


def _grad_reverse_fwd(x, constant):
    return x, None


def _grad_reverse_bwd(constant, _, g):
    return (jnp.negative(g) * constant,)


grad_reverse.defvjp(_grad_reverse_fwd, _grad_reverse_bwd)
# TODO(synk): differentiating *through* the Pallas matmul itself (for training)
# would additionally need a custom VJP around the pallas_call; forward-only here.


# ---------------------------------------------------------------------------
# Kernel: one batch tile -> logits tile.  x:(T,H) @ w:(H,2) + b:(1,2)
# ---------------------------------------------------------------------------
def _discriminator_kernel(x_ref, w_ref, b_ref, o_ref):
    x = x_ref[...]                      # (TILE_B, H)
    w = w_ref[...]                      # (H, 2)  -- VMEM-resident across tiles
    b = b_ref[...]                      # (1, 2)
    logits = jnp.dot(x, w, preferred_element_type=jnp.float32) + b
    o_ref[...] = logits.astype(o_ref.dtype)


# ---------------------------------------------------------------------------
# Tile sizing (generation-aware, conservative).
# ---------------------------------------------------------------------------
def _vmem_budget_bytes():
    try:
        cap = pltpu.get_tpu_info().vmem_capacity_bytes
    except Exception:
        cap = 64 << 20  # v7x has only 64 MiB per TC; be conservative.
    # Leave headroom for W, bias, output double-buffers and compiler scratch.
    return int(min(cap // 2, 48 << 20))


def _pick_tile_b(B, H, itemsize, tile_b=None):
    if tile_b is None:
        budget = _vmem_budget_bytes()
        per_row = H * itemsize
        # The x stream is double-buffered: 2 * TILE_B * H * itemsize dominates.
        max_rows = max(8, budget // (2 * per_row))
        tile_b = min(max(B, 1), max_rows, 2048)
    return max(8, (int(tile_b) // 8) * 8)


# ---------------------------------------------------------------------------
# Wrapper
# ---------------------------------------------------------------------------
def discriminator_forward(x, w_t, b, constant=1.0, *, tile_b=None,
                          force_pallas=False, small_bytes_threshold=1 << 16):
    """Forward pass of Discriminator.

    x        : (B, hidden_dim) float32 (or bfloat16 for a ~2x HBM-bound win)
    w_t      : (hidden_dim, 2)          (transpose of nn.Linear.weight)
    b        : (2,)                     (nn.Linear.bias)
    constant : grad-reverse scale; identity in the forward pass.
    """
    x = grad_reverse(x, constant)       # identity fwd; reversed grad in bwd
    B, H = x.shape
    w_t = w_t.astype(x.dtype)
    b2 = b.reshape(1, 2).astype(x.dtype)

    # Tiny-shape fast path: a standalone pallas_call is pure launch overhead.
    if not force_pallas and B * H * x.dtype.itemsize < small_bytes_threshold:
        return (jnp.dot(x, w_t, preferred_element_type=jnp.float32)
                + b2).astype(x.dtype)

    tile = _pick_tile_b(B, H, x.dtype.itemsize, tile_b)
    n_tiles = pl.cdiv(B, tile)
    b_pad = n_tiles * tile
    if b_pad != B:
        x = jnp.pad(x, ((0, b_pad - B), (0, 0)))

    itemsize = x.dtype.itemsize
    vmem_need = (2 * tile * H * itemsize        # double-buffered x stream
                 + 2 * tile * 2 * itemsize      # double-buffered output
                 + H * 2 * itemsize + (1 << 20))
    vmem_limit = int(min(max(vmem_need, 16 << 20), 64 << 20))

    out = pl.pallas_call(
        _discriminator_kernel,
        out_shape=jax.ShapeDtypeStruct((b_pad, 2), x.dtype),
        grid=(n_tiles,),
        in_specs=[
            pl.BlockSpec((tile, H), lambda i: (i, 0)),   # x: streamed per tile
            pl.BlockSpec((H, 2), lambda i: (0, 0)),      # W: resident
            pl.BlockSpec((1, 2), lambda i: (0, 0)),      # b: resident
        ],
        out_specs=pl.BlockSpec((tile, 2), lambda i: (i, 0)),
        compiler_params=pltpu.CompilerParams(
            dimension_semantics=("parallel",),           # 2 TCs on v7x
            vmem_limit_bytes=vmem_limit,
        ),
    )(x, w_t, b2)
    return out[:B]


def init_params(hidden_dim, key):
    """Matches nn.Linear's default U(-1/sqrt(fan_in), 1/sqrt(fan_in))."""
    k_w, k_b = jax.random.split(key)
    bound = 1.0 / jnp.sqrt(jnp.float32(hidden_dim))
    # nn.Linear.weight has shape (2, hidden_dim); we store its transpose.
    w = jax.random.uniform(k_w, (2, hidden_dim), jnp.float32, -bound, bound)
    b = jax.random.uniform(k_b, (2,), jnp.float32, -bound, bound)
    return w.T, b


if __name__ == "__main__":
    key = jax.random.PRNGKey(0)
    k_x, k_p, k_x2, k_p2 = jax.random.split(key, 4)

    constant = 0.5

    # Case 1: module-scale small shapes (batch=8, hidden=32); force Pallas path.
    batch, hidden_dim = 8, 32
    x = jax.random.normal(k_x, (batch, hidden_dim), jnp.float32)
    w_t, bias = init_params(hidden_dim, k_p)
    logits = discriminator_forward(x, w_t, bias, constant, force_pallas=True)
    logits = jax.block_until_ready(logits)
    ref = x @ w_t + bias.reshape(1, 2)
    assert logits.shape == (batch, 2)
    assert jnp.allclose(logits, ref, atol=1e-5, rtol=1e-5)

    # Case 2: exercise batch tiling + ragged padding (B not a tile multiple).
    B2, H2 = 264, 128
    x2 = jax.random.normal(k_x2, (B2, H2), jnp.float32)
    w_t2, bias2 = init_params(H2, k_p2)
    logits2 = discriminator_forward(x2, w_t2, bias2, constant,
                                    tile_b=64, force_pallas=True)
    logits2 = jax.block_until_ready(logits2)
    ref2 = x2 @ w_t2 + bias2.reshape(1, 2)
    assert logits2.shape == (B2, 2)
    assert jnp.allclose(logits2, ref2, atol=1e-4, rtol=1e-4)

    print("KERNEL_OK")
</pallas_src>

<mosaic_0001>
module attributes {stable_mosaic.version = 11 : i64} {
  func.func @_discriminator_kernel(%arg0: i32, %arg1: memref<8x32xf32, #tpu.memory_space<vmem>>, %arg2: memref<32x2xf32, #tpu.memory_space<vmem>>, %arg3: memref<1x2xf32, #tpu.memory_space<vmem>>, %arg4: memref<8x2xf32, #tpu.memory_space<vmem>>) attributes {dimension_semantics = [#tpu.dimension_semantics<parallel>], iteration_bounds = array<i64: 1>, scalar_prefetch = 0 : i64, scratch_operands = 0 : i64, tpu.core_type = #tpu.core_type<tc>, window_params = [{transform_indices = @transform_0, window_bounds = array<i64: 8, 32>}, {pipeline_mode = #tpu.pipeline_mode<synchronous>, transform_indices = @transform_1, window_bounds = array<i64: 32, 2>}, {pipeline_mode = #tpu.pipeline_mode<synchronous>, transform_indices = @transform_2, window_bounds = array<i64: 1, 2>}, {transform_indices = @transform_3, window_bounds = array<i64: 8, 2>}]} {
    %c0 = arith.constant 0 : index
    %c0_0 = arith.constant 0 : index
    %0 = vector.load %arg1[%c0, %c0_0] : memref<8x32xf32, #tpu.memory_space<vmem>>, vector<8x32xf32>
    %c0_1 = arith.constant 0 : index
    %c0_2 = arith.constant 0 : index
    %1 = vector.load %arg2[%c0_1, %c0_2] : memref<32x2xf32, #tpu.memory_space<vmem>>, vector<32x2xf32>
    %c0_3 = arith.constant 0 : index
    %c0_4 = arith.constant 0 : index
    %2 = vector.load %arg3[%c0_3, %c0_4] : memref<1x2xf32, #tpu.memory_space<vmem>>, vector<1x2xf32>
    %cst = arith.constant dense<0.000000e+00> : vector<8x2xf32>
    %3 = tpu.matmul %0, %1, %cst {dimension_numbers = #tpu.dot_dimension_numbers<[1], [0], [0], [1], [0, 0, 1, 1], [], []>} : vector<8x32xf32>, vector<32x2xf32>, vector<8x2xf32> -> vector<8x2xf32>
    %4 = vector.broadcast %2 : vector<1x2xf32> to vector<8x2xf32>
    %5 = arith.addf %3, %4 : vector<8x2xf32>
    %c0_5 = arith.constant 0 : index
    %c0_6 = arith.constant 0 : index
    %6 = vector.load %arg4[%c0_5, %c0_6] : memref<8x2xf32, #tpu.memory_space<vmem>>, vector<8x2xf32>
    tpu.vector_store %arg4[%c0_5, %c0_6], %5 {strides = array<i32>} : memref<8x2xf32, #tpu.memory_space<vmem>>, vector<8x2xf32>,
    return
  }
  func.func @transform_0(%arg0: i32) -> (i32, i32) {
    %c0_i32 = arith.constant 0 : i32
    %c0_i32_0 = arith.constant 0 : i32
    return %arg0, %c0_i32 : i32, i32
  }
  func.func @transform_1(%arg0: i32) -> (i32, i32) {
    %c0_i32 = arith.constant 0 : i32
    %c0_i32_0 = arith.constant 0 : i32
    %c0_i32_1 = arith.constant 0 : i32
    return %c0_i32, %c0_i32_0 : i32, i32
  }
  func.func @transform_2(%arg0: i32) -> (i32, i32) {
    %c0_i32 = arith.constant 0 : i32
    %c0_i32_0 = arith.constant 0 : i32
    %c0_i32_1 = arith.constant 0 : i32
    return %c0_i32, %c0_i32_0 : i32, i32
  }
  func.func @transform_3(%arg0: i32) -> (i32, i32) {
    %c0_i32 = arith.constant 0 : i32
    %c0_i32_0 = arith.constant 0 : i32
    return %arg0, %c0_i32 : i32, i32
  }
}

</mosaic_0001>

<llo_original>
// kernel: tpu_custom_call.1
$region0: #{tpu_custom_call.1}
  #allocation0 [shape = 'u32[]', space=smem, size = 0x4, offset = 0x4, fixed_abs, tag = 'smem constant byte address 0x4 - core index']
  #allocation1 [shape = 'u32[144,128]{1,0:T(1,128)}', space=vmem, size = 0x12000, scoped, tag = 'internal scratch']
  %s0 = inlined_call_operand.vmem [shape: f32[8,32], index: 0, kind: input, shape index: {}]
  %s1 = inlined_call_operand.vmem [shape: f32[32,2], index: 1, kind: input, shape index: {}]
  %s2 = inlined_call_operand.vmem [shape: f32[1,2], index: 2, kind: input, shape index: {}]
  %s3 = inlined_call_operand.vmem [shape: f32[8,2], index: 3, kind: output, shape index: {}]
  %s4 = sld [smem:[#allocation0]]
  $region22: #{tpu_custom_call.1} parent=0
    _
  %s6 = ssub.s32 1, %s4
  %s7 = scalar_select 0, %s6, %s4
  // Predicated region
  $region2: #{tpu_custom_call.1} parent=0 // pred_check
    _
  $region3: #{tpu_custom_call.1} parent=0 // pred_check_branch
    %9 = sbr.rel (0) target = $region5
  $region4: #{tpu_custom_call.1} parent=0 // pred_region
    _
  $region5: #{tpu_custom_call.1} parent=0 // pred_fallthru
    _
  // Predicated region
  $region6: #{tpu_custom_call.1} parent=0 // pred_check
    _
  $region7: #{tpu_custom_call.1} parent=0 // pred_check_branch
    %11 = sbr.rel (0) target = $region9
  $region8: #{tpu_custom_call.1} parent=0 // pred_region
    _
  $region9: #{tpu_custom_call.1} parent=0 // pred_fallthru
    _
  // Predicated region
  $region10: #{tpu_custom_call.1} parent=0 // pred_check
    _
  $region11: #{tpu_custom_call.1} parent=0 // pred_check_branch
    %13 = sbr.rel (0) target = $region13
  $region12: #{tpu_custom_call.1} parent=0 // pred_region
    _
  $region13: #{tpu_custom_call.1} parent=0 // pred_fallthru
    _
  %v14 = vld [vmem:[%s0] sm:$0xff]
  %v15 = vld [vmem:[%s1] sm:$0xff]
  %v16 = vld [vmem:[%s1 + $0x8] sm:$0xff]
  %v17 = vld [vmem:[%s1 + $0x10] sm:$0xff]
  %v18 = vld [vmem:[%s1 + $0x18] sm:$0xff]
  %v19 = vld [vmem:[%s2] sm:$0x1]
  %v21 = vlaneseq
  %v22 = vshrl.u32 %v21, 7
  %v23 = vsub.s32 0, %v22
  %v24 = vrot.slane %v19, %v23
  %vm26 = vcmask 261120
  %v28 = vsel %vm26, %v14, 0
  %30 = vmatprep.subr.mxu0 0.0
  %31 = vmatpush1.msra.mxu0 %v15
  %32 = vmatprep.subr.mxu0 0.0
  %33 = vmatpush1.msra.mxu0 %v16
  %34 = vmatprep.subr.mxu0 0.0
  %35 = vmatpush1.msra.mxu0 %v17
  %36 = vmatprep.subr.mxu0 0.0
  %37 = vmatpush1.msra.mxu0 %v18
  %38 = vmatprep.subr.mxu0 0.0
  %39 = vmatpush1.msra.mxu0 0.0
  %40 = vmatprep.subr.mxu0 0.0
  %41 = vmatpush1.msra.mxu0 0.0
  %42 = vmatprep.subr.mxu0 0.0
  %43 = vmatpush1.msra.mxu0 0.0
  %44 = vmatprep.subr.mxu0 0.0
  %45 = vmatpush1.msra.mxu0 0.0
  %46 = vmatprep.subr.mxu0 0.0
  %47 = vmatpush1.msra.mxu0 0.0
  %48 = vmatprep.subr.mxu0 0.0
  %49 = vmatpush1.msra.mxu0 0.0
  %50 = vmatprep.subr.mxu0 0.0
  %51 = vmatpush1.msra.mxu0 0.0
  %52 = vmatprep.subr.mxu0 0.0
  %53 = vmatpush1.msra.mxu0 0.0
  %54 = vmatprep.subr.mxu0 0.0
  %55 = vmatpush1.msra.mxu0 0.0
  %56 = vmatprep.subr.mxu0 0.0
  %57 = vmatpush1.msra.mxu0 0.0
  %58 = vmatprep.subr.mxu0 0.0
  %59 = vmatpush1.msra.mxu0 0.0
  %60 = vmatprep.subr.mxu0 0.0
  %61 = vmatpush1.msra.mxu0 0.0
  %62 = vmatprep.subr.mxu0 0.0
  %63 = vmatpush1.msra.mxu0 0.0
  %64 = vmatprep.subr.mxu0 0.0
  %65 = vmatpush1.msra.mxu0 0.0
  %66 = vmatprep.subr.mxu0 0.0
  %67 = vmatpush1.msra.mxu0 0.0
  %68 = vmatprep.subr.mxu0 0.0
  %69 = vmatpush1.msra.mxu0 0.0
  %70 = vmatprep.subr.mxu0 0.0
  %71 = vmatpush1.msra.mxu0 0.0
  %72 = vmatprep.subr.mxu0 0.0
  %73 = vmatpush1.msra.mxu0 0.0
  %74 = vmatprep.subr.mxu0 0.0
  %75 = vmatpush1.msra.mxu0 0.0
  %76 = vmatprep.subr.mxu0 0.0
  %77 = vmatpush1.msra.mxu0 0.0
  %78 = vmatprep.subr.mxu0 0.0
  %79 = vmatpush1.msra.mxu0 0.0
  %80 = vmatprep.subr.mxu0 0.0
  %81 = vmatpush1.msra.mxu0 0.0
  %82 = vmatprep.subr.mxu0 0.0
  %83 = vmatpush1.msra.mxu0 0.0
  %84 = vmatprep.subr.mxu0 0.0
  %85 = vmatpush1.msra.mxu0 0.0
  %86 = vmatprep.subr.mxu0 0.0
  %87 = vmatpush1.msra.mxu0 0.0
  %88 = vmatprep.subr.mxu0 0.0
  %89 = vmatpush1.msra.mxu0 0.0
  %90 = vmatprep.subr.mxu0 0.0
  %91 = vmatpush1.msra.mxu0 0.0
  %92 = vmatprep.subr.mxu0 0.0
  %93 = vmatpush1.msra.mxu0 0.0
  %94 = vmatprep.mubr.f32.mxu0 0.0
  %95 = vmatmul.mubr.f32.gmra.mrb[0].mxu0 %v28
  %v96 = vpop.f32.mrb[0].mxu0
  %v97 = vadd.f32 %v24, %v96
  %v98 = vpop.f32.mrb[0].mxu0
  %99 = vdwg.mxu0
  %vm100 = vcmask 15360
  %101 = vst.msk [vmem:[%s3] sm:$0xff] %vm100, %v97
  // Predicated region
  $region14: #{tpu_custom_call.1} parent=0 // pred_check
    _
  $region15: #{tpu_custom_call.1} parent=0 // pred_check_branch
    %103 = sbr.rel (0) target = $region17
  $region16: #{tpu_custom_call.1} parent=0 // pred_region
    _
  $region17: #{tpu_custom_call.1} parent=0 // pred_fallthru
    _
  // Predicated region
  $region18: #{tpu_custom_call.1} parent=0 // pred_check
    _
  $region19: #{tpu_custom_call.1} parent=0 // pred_check_branch
    %105 = sbr.rel (0) target = $region21
  $region20: #{tpu_custom_call.1} parent=0 // pred_region
    _
  $region21: #{tpu_custom_call.1} parent=0 // pred_fallthru
    _

</llo_original>
